<compile_context>
chip_gen: v6e
topology: v6e:2x2x1
jax: 0.10.0
libtpu: 0.0.40
codegen_flags: <defaults>
</compile_context>

<pallas_src>
import math

import jax
import jax.numpy as jnp
from jax import lax
from jax.experimental import pallas as pl
from jax.experimental.pallas import tpu as pltpu


_ROW_ALIGN = 16  # legal sublane multiple for both f32 (8) and bf16 (16) tiles


def _round_up(x: int, m: int) -> int:
    return ((x + m - 1) // m) * m


def _vmem_capacity_bytes() -> int:
    """Per-core VMEM capacity; conservative 64 MiB (v7x) fallback."""
    try:
        info = pltpu.get_tpu_info()
        for attr in ("vmem_capacity_bytes", "vmem_size_bytes", "vmem_bytes"):
            v = getattr(info, attr, None)
            if v:
                return int(v)
    except Exception:
        pass
    return 64 * 1024 * 1024


# ----------------------------------------------------------------------------
# Kernels
# ----------------------------------------------------------------------------
def _make_resident_kernel(n_layers: int, use_scratch: bool, unroll):
    """Whole weight stack resident in VMEM; layer loop folded into the kernel.

    x_ref: (TM, Dp)      input row tile
    w_ref: (L, Dp, Dp)   all layer weights (bf16), DMA'd once
    b_ref: (L, 1, Dp)    all layer biases (f32)
    o_ref: (TM, Dp)      output row tile
    h_ref: (TM, Dp) f32  residual scratch (only when output dtype != f32)
    """
    if use_scratch:
        def kernel(x_ref, w_ref, b_ref, o_ref, h_ref):
            h_ref[...] = x_ref[...].astype(jnp.float32)

            def body(l, carry):
                h = h_ref[...]
                w = w_ref[l]                                  # (Dp, Dp) bf16
                y = jnp.tanh(
                    jnp.dot(h.astype(w.dtype), w,
                            preferred_element_type=jnp.float32) + b_ref[l])
                # SkipConnection: norm(0.5*(inp + drop(block(inp)))) with
                # drop = Dropout(0.0) and norm = Identity.
                h_ref[...] = 0.5 * (h + y)
                return carry

            lax.fori_loop(0, n_layers, body, 0, unroll=unroll)
            o_ref[...] = h_ref[...].astype(o_ref.dtype)
    else:
        def kernel(x_ref, w_ref, b_ref, o_ref):
            o_ref[...] = x_ref[...]            # f32 residual lives in o_ref

            def body(l, carry):
                h = o_ref[...]
                w = w_ref[l]
                y = jnp.tanh(
                    jnp.dot(h.astype(w.dtype), w,
                            preferred_element_type=jnp.float32) + b_ref[l])
                o_ref[...] = 0.5 * (h + y)
                return carry

            lax.fori_loop(0, n_layers, body, 0, unroll=unroll)

    return kernel


def _streamed_kernel_f32(x_ref, w_ref, b_ref, o_ref):
    """Layer index = trailing 'arbitrary' grid axis; f32 output accumulates
    directly in the resident output tile (no scratch, no final copy)."""
    l = pl.program_id(1)

    @pl.when(l == 0)
    def _():
        o_ref[...] = x_ref[...]

    h = o_ref[...]
    w = w_ref[0]                                              # (Dp, Dp) bf16
    y = jnp.tanh(
        jnp.dot(h.astype(w.dtype), w, preferred_element_type=jnp.float32)
        + b_ref[0])
    o_ref[...] = 0.5 * (h + y)


def _streamed_kernel_scratch(x_ref, w_ref, b_ref, o_ref, h_ref):
    """Streamed-weight variant with an f32 scratch for non-f32 outputs."""
    l = pl.program_id(1)

    @pl.when(l == 0)
    def _():
        h_ref[...] = x_ref[...].astype(jnp.float32)

    h = h_ref[...]
    w = w_ref[0]
    y = jnp.tanh(
        jnp.dot(h.astype(w.dtype), w, preferred_element_type=jnp.float32)
        + b_ref[0])
    h_new = 0.5 * (h + y)
    h_ref[...] = h_new

    @pl.when(l == pl.num_programs(1) - 1)
    def _():
        o_ref[...] = h_new.astype(o_ref.dtype)


# ----------------------------------------------------------------------------
# Wrapper
# ----------------------------------------------------------------------------
def repeat_forward(x, weights, biases, *, tile_rows=1024,
                   compute_dtype=jnp.bfloat16, force_streamed=False):
    """Apply the repeated skip-connection stack.

    x:       (..., D)
    weights: (L, D, D)
    biases:  (L, D)
    """
    lead, D = x.shape[:-1], x.shape[-1]
    rows = math.prod(lead)
    L = weights.shape[0]
    assert weights.shape == (L, D, D) and biases.shape == (L, D)

    out_dtype = x.dtype
    use_scratch = out_dtype != jnp.float32
    x_itemsize = jnp.dtype(out_dtype).itemsize
    w_itemsize = jnp.dtype(compute_dtype).itemsize

    Dp = _round_up(D, 128)                     # lane-dense model dim
    vmem_cap = _vmem_capacity_bytes()
    budget = max(vmem_cap - (16 << 20), 24 << 20)

    def _row_bytes(t):
        rb = 4 * t * Dp * x_itemsize           # 2x x-tile + 2x out-tile (dbl-buffered)
        if use_scratch:
            rb += t * Dp * 4                    # f32 residual scratch
        return rb

    # Row tile: big (amortizes grid-step overhead, raises FLOP/weight-byte),
    # 16-aligned, shrunk for tiny inputs / the VMEM budget.
    tm = min(int(tile_rows), _round_up(rows, _ROW_ALIGN))
    if rows <= tm and tm >= 512:
        # v7x megacore: one big row tile would leave a TensorCore idle.
        tm = _round_up((tm + 1) // 2, _ROW_ALIGN)
    streamed_w_bytes = 2 * (Dp * Dp * w_itemsize + Dp * 4)
    while tm > _ROW_ALIGN and _row_bytes(tm) + streamed_w_bytes > budget:
        tm = _round_up(tm // 2, _ROW_ALIGN)

    rows_p = _round_up(rows, tm)
    n_row_tiles = rows_p // tm

    # Resident weights if the whole (pipeline-buffered) stack fits the budget.
    resident_w_bytes = 2 * L * (Dp * Dp * w_itemsize + Dp * 4)
    use_resident = (not force_streamed) and \
        (_row_bytes(tm) + resident_w_bytes <= budget)

    # ---- parameter padding / cast (directly in compute_dtype, no f32 copy) --
    if Dp == D:
        w_p = weights.astype(compute_dtype)
        b_p = biases.astype(jnp.float32).reshape(L, 1, D)
    else:
        w_p = (jnp.zeros((L, Dp, Dp), compute_dtype)
               .at[:, :D, :D].set(weights.astype(compute_dtype)))
        b_p = (jnp.zeros((L, 1, Dp), jnp.float32)
               .at[:, 0, :D].set(biases.astype(jnp.float32)))

    x2 = x.reshape(rows, D)
    if rows_p != rows or Dp != D:
        x2 = jnp.zeros((rows_p, Dp), out_dtype).at[:rows, :D].set(x2)

    # ---- pallas_call configuration -----------------------------------------
    footprint = _row_bytes(tm) + (resident_w_bytes if use_resident
                                  else streamed_w_bytes)
    vmem_limit = max(int(footprint * 1.25) + (4 << 20), 32 << 20)
    vmem_limit = min(vmem_limit, vmem_cap - (8 << 20))

    if use_resident:
        kernel = _make_resident_kernel(L, use_scratch, unroll=(L <= 8))
        grid = (n_row_tiles,)
        in_specs = [
            pl.BlockSpec((tm, Dp), lambda i: (i, 0)),
            pl.BlockSpec((L, Dp, Dp), lambda i: (0, 0, 0)),  # resident stack
            pl.BlockSpec((L, 1, Dp), lambda i: (0, 0, 0)),
        ]
        out_specs = pl.BlockSpec((tm, Dp), lambda i: (i, 0))
        dim_sem = ("parallel",)
    else:
        kernel = _streamed_kernel_scratch if use_scratch else _streamed_kernel_f32
        grid = (n_row_tiles, L)
        in_specs = [
            pl.BlockSpec((tm, Dp), lambda i, l: (i, 0)),
            pl.BlockSpec((1, Dp, Dp), lambda i, l: (l, 0, 0)),  # streamed layer
            pl.BlockSpec((1, 1, Dp), lambda i, l: (l, 0, 0)),
        ]
        out_specs = pl.BlockSpec((tm, Dp), lambda i, l: (i, 0))  # resident over l
        dim_sem = ("parallel", "arbitrary")

    scratch_shapes = ([pltpu.VMEM((tm, Dp), jnp.float32)]
                      if use_scratch else [])

    out2 = pl.pallas_call(
        kernel,
        out_shape=jax.ShapeDtypeStruct((rows_p, Dp), out_dtype),
        grid_spec=pltpu.PrefetchScalarGridSpec(
            num_scalar_prefetch=0,
            grid=grid,
            in_specs=in_specs,
            out_specs=out_specs,
            scratch_shapes=scratch_shapes,
        ),
        compiler_params=pltpu.CompilerParams(
            dimension_semantics=dim_sem,
            vmem_limit_bytes=int(vmem_limit),
        ),
    )(x2, w_p, b_p)

    return out2[:rows, :D].reshape(*lead, D)


# ----------------------------------------------------------------------------
# Reference & init
# ----------------------------------------------------------------------------
def init_params(key, n_layers, mod_dim, dtype=jnp.float32):
    """Deterministic PyTorch-Linear-style init: U(-1/sqrt(D), 1/sqrt(D))."""
    bound = 1.0 / jnp.sqrt(jnp.array(mod_dim, jnp.float32))
    kw, kb = jax.random.split(key)
    weights = jax.random.uniform(
        kw, (n_layers, mod_dim, mod_dim), dtype, minval=-bound, maxval=bound)
    biases = jax.random.uniform(
        kb, (n_layers, mod_dim), dtype, minval=-bound, maxval=bound)
    return weights, biases


def repeat_reference(x, weights, biases, compute_dtype=jnp.bfloat16):
    """Pure-JAX reference mirroring the kernel's bf16-matmul / f32-residual."""
    h = x.astype(jnp.float32)
    for l in range(weights.shape[0]):
        w = weights[l].astype(compute_dtype)
        y = jnp.tanh(
            jnp.dot(h.astype(compute_dtype), w,
                    preferred_element_type=jnp.float32)
            + biases[l].astype(jnp.float32))
        h = 0.5 * (h + y)
    return h.astype(x.dtype)


if __name__ == "__main__":
    key = jax.random.PRNGKey(0)
    k_x, k_p = jax.random.split(key)

    batch, seq, mod_dim = 2, 8, 32
    n_layers = 2

    x = jax.random.normal(k_x, (batch, seq, mod_dim), dtype=jnp.float32)
    weights, biases = init_params(k_p, n_layers, mod_dim)
    ref = repeat_reference(x, weights, biases)

    # Resident-weight path (auto-selected for this small stack).
    out_res = jax.block_until_ready(repeat_forward(x, weights, biases))
    assert out_res.shape == x.shape and out_res.dtype == x.dtype
    assert jnp.allclose(out_res, ref, atol=1e-3, rtol=1e-3), "resident mismatch"

    # Streamed-weight path (forced), exercises the layer grid axis.
    out_str = jax.block_until_ready(
        repeat_forward(x, weights, biases, force_streamed=True))
    assert jnp.allclose(out_str, ref, atol=1e-3, rtol=1e-3), "streamed mismatch"

    # Non-f32 output exercises the f32-scratch epilogue path.
    x_bf = x.astype(jnp.bfloat16)
    ref_bf = repeat_reference(x_bf, weights, biases)
    out_bf = jax.block_until_ready(repeat_forward(x_bf, weights, biases))
    assert out_bf.dtype == jnp.bfloat16
    assert jnp.allclose(out_bf.astype(jnp.float32), ref_bf.astype(jnp.float32),
                        atol=2e-2, rtol=2e-2), "bf16 mismatch"

    print("KERNEL_OK")
</pallas_src>

<mosaic_0001>
module attributes {stable_mosaic.version = 11 : i64} {
  func.func @kernel(%arg0: i32, %arg1: memref<16x128xf32, #tpu.memory_space<vmem>>, %arg2: memref<2x128x128xbf16, #tpu.memory_space<vmem>>, %arg3: memref<2x1x128xf32, #tpu.memory_space<vmem>>, %arg4: memref<16x128xf32, #tpu.memory_space<vmem>>) attributes {dimension_semantics = [#tpu.dimension_semantics<parallel>], iteration_bounds = array<i64: 1>, scalar_prefetch = 0 : i64, scratch_operands = 0 : i64, tpu.core_type = #tpu.core_type<tc>, window_params = [{transform_indices = @transform_0, window_bounds = array<i64: 16, 128>}, {pipeline_mode = #tpu.pipeline_mode<synchronous>, transform_indices = @transform_1, window_bounds = array<i64: 2, 128, 128>}, {pipeline_mode = #tpu.pipeline_mode<synchronous>, transform_indices = @transform_2, window_bounds = array<i64: 2, 1, 128>}, {transform_indices = @transform_3, window_bounds = array<i64: 16, 128>}]} {
    %c0 = arith.constant 0 : index
    %c0_0 = arith.constant 0 : index
    %0 = vector.load %arg1[%c0, %c0_0] : memref<16x128xf32, #tpu.memory_space<vmem>>, vector<16x128xf32>
    %c0_1 = arith.constant 0 : index
    %c0_2 = arith.constant 0 : index
    %1 = vector.load %arg4[%c0_1, %c0_2] : memref<16x128xf32, #tpu.memory_space<vmem>>, vector<16x128xf32>
    tpu.vector_store %arg4[%c0_1, %c0_2], %0 {strides = array<i32>} : memref<16x128xf32, #tpu.memory_space<vmem>>, vector<16x128xf32>,
    %c0_i32 = arith.constant 0 : i32
    %c0_3 = arith.constant 0 : index
    %c0_4 = arith.constant 0 : index
    %2 = vector.load %arg4[%c0_3, %c0_4] : memref<16x128xf32, #tpu.memory_space<vmem>>, vector<16x128xf32>
    %3 = arith.index_cast %c0_i32 : i32 to index
    %c0_5 = arith.constant 0 : index
    %c0_6 = arith.constant 0 : index
    %4 = vector.load %arg2[%3, %c0_5, %c0_6] : memref<2x128x128xbf16, #tpu.memory_space<vmem>>, vector<1x128x128xbf16>
    %5 = vector.shape_cast %4 : vector<1x128x128xbf16> to vector<128x128xbf16>
    %6 = arith.truncf %2 : vector<16x128xf32> to vector<16x128xbf16>
    %cst = arith.constant dense<0.000000e+00> : vector<16x128xf32>
    %7 = tpu.matmul %6, %5, %cst {dimension_numbers = #tpu.dot_dimension_numbers<[1], [0], [0], [1], [0, 0, 1, 1], [], []>} : vector<16x128xbf16>, vector<128x128xbf16>, vector<16x128xf32> -> vector<16x128xf32>
    %8 = arith.index_cast %c0_i32 : i32 to index
    %c0_7 = arith.constant 0 : index
    %c0_8 = arith.constant 0 : index
    %9 = vector.load %arg3[%8, %c0_7, %c0_8] : memref<2x1x128xf32, #tpu.memory_space<vmem>>, vector<1x1x128xf32>
    %10 = vector.shape_cast %9 : vector<1x1x128xf32> to vector<1x128xf32>
    %11 = vector.broadcast %10 : vector<1x128xf32> to vector<16x128xf32>
    %12 = arith.addf %7, %11 : vector<16x128xf32>
    %13 = math.tanh %12 : vector<16x128xf32>
    %14 = arith.addf %2, %13 : vector<16x128xf32>
    %cst_9 = arith.constant 5.000000e-01 : f32
    %15 = vector.broadcast %cst_9 : f32 to vector<16x128xf32>
    %16 = arith.mulf %15, %14 : vector<16x128xf32>
    %c0_10 = arith.constant 0 : index
    %c0_11 = arith.constant 0 : index
    %17 = vector.load %arg4[%c0_10, %c0_11] : memref<16x128xf32, #tpu.memory_space<vmem>>, vector<16x128xf32>
    tpu.vector_store %arg4[%c0_10, %c0_11], %16 {strides = array<i32>} : memref<16x128xf32, #tpu.memory_space<vmem>>, vector<16x128xf32>,
    %c1_i32 = arith.constant 1 : i32
    %c0_12 = arith.constant 0 : index
    %c0_13 = arith.constant 0 : index
    %18 = vector.load %arg4[%c0_12, %c0_13] : memref<16x128xf32, #tpu.memory_space<vmem>>, vector<16x128xf32>
    %19 = arith.index_cast %c1_i32 : i32 to index
    %c0_14 = arith.constant 0 : index
    %c0_15 = arith.constant 0 : index
    %20 = vector.load %arg2[%19, %c0_14, %c0_15] : memref<2x128x128xbf16, #tpu.memory_space<vmem>>, vector<1x128x128xbf16>
    %21 = vector.shape_cast %20 : vector<1x128x128xbf16> to vector<128x128xbf16>
    %22 = arith.truncf %18 : vector<16x128xf32> to vector<16x128xbf16>
    %cst_16 = arith.constant dense<0.000000e+00> : vector<16x128xf32>
    %23 = tpu.matmul %22, %21, %cst_16 {dimension_numbers = #tpu.dot_dimension_numbers<[1], [0], [0], [1], [0, 0, 1, 1], [], []>} : vector<16x128xbf16>, vector<128x128xbf16>, vector<16x128xf32> -> vector<16x128xf32>
    %24 = arith.index_cast %c1_i32 : i32 to index
    %c0_17 = arith.constant 0 : index
    %c0_18 = arith.constant 0 : index
    %25 = vector.load %arg3[%24, %c0_17, %c0_18] : memref<2x1x128xf32, #tpu.memory_space<vmem>>, vector<1x1x128xf32>
    %26 = vector.shape_cast %25 : vector<1x1x128xf32> to vector<1x128xf32>
    %27 = vector.broadcast %26 : vector<1x128xf32> to vector<16x128xf32>
    %28 = arith.addf %23, %27 : vector<16x128xf32>
    %29 = math.tanh %28 : vector<16x128xf32>
    %30 = arith.addf %18, %29 : vector<16x128xf32>
    %cst_19 = arith.constant 5.000000e-01 : f32
    %31 = vector.broadcast %cst_19 : f32 to vector<16x128xf32>
    %32 = arith.mulf %31, %30 : vector<16x128xf32>
    %c0_20 = arith.constant 0 : index
    %c0_21 = arith.constant 0 : index
    %33 = vector.load %arg4[%c0_20, %c0_21] : memref<16x128xf32, #tpu.memory_space<vmem>>, vector<16x128xf32>
    tpu.vector_store %arg4[%c0_20, %c0_21], %32 {strides = array<i32>} : memref<16x128xf32, #tpu.memory_space<vmem>>, vector<16x128xf32>,
    %c2_i32 = arith.constant 2 : i32
    return
  }
  func.func @transform_0(%arg0: i32) -> (i32, i32) {
    %c0_i32 = arith.constant 0 : i32
    %c0_i32_0 = arith.constant 0 : i32
    return %arg0, %c0_i32 : i32, i32
  }
  func.func @transform_1(%arg0: i32) -> (i32, i32, i32) {
    %c0_i32 = arith.constant 0 : i32
    %c0_i32_0 = arith.constant 0 : i32
    %c0_i32_1 = arith.constant 0 : i32
    %c0_i32_2 = arith.constant 0 : i32
    return %c0_i32, %c0_i32_0, %c0_i32_1 : i32, i32, i32
  }
  func.func @transform_2(%arg0: i32) -> (i32, i32, i32) {
    %c0_i32 = arith.constant 0 : i32
    %c0_i32_0 = arith.constant 0 : i32
    %c0_i32_1 = arith.constant 0 : i32
    %c0_i32_2 = arith.constant 0 : i32
    return %c0_i32, %c0_i32_0, %c0_i32_1 : i32, i32, i32
  }
  func.func @transform_3(%arg0: i32) -> (i32, i32) {
    %c0_i32 = arith.constant 0 : i32
    %c0_i32_0 = arith.constant 0 : i32
    return %arg0, %c0_i32 : i32, i32
  }
}

</mosaic_0001>

<llo_original>
// kernel: tpu_custom_call.1
$region0: #{tpu_custom_call.1}
  #allocation0 [shape = 'u32[]', space=smem, size = 0x4, offset = 0x4, fixed_abs, tag = 'smem constant byte address 0x4 - core index']
  #allocation1 [shape = 'u32[144,128]{1,0:T(1,128)}', space=vmem, size = 0x12000, scoped, tag = 'internal scratch']
  %s0 = inlined_call_operand.hbm [shape: f32[16,128], index: 0, kind: input, shape index: {}]
  %s1 = inlined_call_operand.hbm [shape: bf16[2,128,128], index: 1, kind: input, shape index: {}]
  %s2 = inlined_call_operand.vmem [shape: f32[2,1,128], index: 2, kind: input, shape index: {}]
  %s3 = inlined_call_operand.hbm [shape: f32[16,128], index: 3, kind: output, shape index: {}]
  %s4 = sld [smem:[#allocation0]]
  $region30: #{tpu_custom_call.1} parent=0
    _
  %s6 = ssub.s32 1, %s4
  %s7 = scalar_select 0, %s6, %s4
  $region1: #{tpu_custom_call.1} parent=0
    #allocation2 [shape = 'u8[8192]{0}', space=vmem, size = 0x2000, scoped, tag = 'input window, operand 0, single buffered']
    #allocation3 [shape = 's32[1]{0}', space=sflag, size = 0x4, scoped, tag = 'scoped memory for tpu_custom_call.1']
    #allocation4 [shape = 's32[1]{0}', space=sflag, size = 0x4, scoped, tag = 'scoped memory for tpu_custom_call.1']
    #allocation5 [shape = 'u8[65536]{0}', space=vmem, size = 0x10000, scoped, tag = 'input window, operand 1, single buffered']
    #allocation6 [shape = 's32[1]{0}', space=sflag, size = 0x4, scoped, tag = 'scoped memory for tpu_custom_call.1']
    #allocation7 [shape = 'u8[8192]{0}', space=vmem, size = 0x2000, scoped, tag = 'output window, operand 0, single buffered']
    %8 = vsyncpa [#allocation3], 0
    %9 = vsyncpa [#allocation6], 0
    %10 = vsyncpa [#allocation4], 0
    // Predicated region
    $region2: #{tpu_custom_call.1} parent=1 // pred_check
      _
    $region3: #{tpu_custom_call.1} parent=1 // pred_check_branch
      %12 = sbr.rel (0) target = $region5
    $region4: #{tpu_custom_call.1} parent=1 // pred_region
      %s14 = ssub.s32 256, 256
      %15 = vsyncadd [#allocation3], %s14
      %s16 = sshll.u32 [#allocation2], 4
      %s17 = int_to_ptr.vmem [resolvable:$true] %s16
      %22 = dma.hbm_to_vmem [thread:$0]  %s0, 256, %s17, [#allocation3], 128, 128, 8
    $region5: #{tpu_custom_call.1} parent=1 // pred_fallthru
      _
    // Predicated region
    $region6: #{tpu_custom_call.1} parent=1 // pred_check
      _
    $region7: #{tpu_custom_call.1} parent=1 // pred_check_branch
      %24 = sbr.rel (0) target = $region9
    $region8: #{tpu_custom_call.1} parent=1 // pred_region
      %s26 = ssub.s32 2048, 2048
      %27 = vsyncadd [#allocation6], %s26
      %s28 = sshll.u32 [#allocation5], 4
      %s29 = int_to_ptr.vmem [resolvable:$true] %s28
      %34 = dma.hbm_to_vmem [thread:$0]  %s1, 2048, %s29, [#allocation6], 64, 64, 4
    $region9: #{tpu_custom_call.1} parent=1 // pred_fallthru
      _
    // Predicated region
    $region10: #{tpu_custom_call.1} parent=1 // pred_check
      _
    $region11: #{tpu_custom_call.1} parent=1 // pred_check_branch
      %36 = sbr.rel (0) target = $region13
    $region12: #{tpu_custom_call.1} parent=1 // pred_region
      _
    $region13: #{tpu_custom_call.1} parent=1 // pred_fallthru
      _
    // Predicated region
    $region14: #{tpu_custom_call.1} parent=1 // pred_check
      _
    $region15: #{tpu_custom_call.1} parent=1 // pred_check_branch
      %38 = sbr.rel (0) target = $region17
    $region16: #{tpu_custom_call.1} parent=1 // pred_region
      %39 = dma.done [#allocation3], 256
    $region17: #{tpu_custom_call.1} parent=1 // pred_fallthru
      _
    // Predicated region
    $region18: #{tpu_custom_call.1} parent=1 // pred_check
      _
    $region19: #{tpu_custom_call.1} parent=1 // pred_check_branch
      %41 = sbr.rel (0) target = $region21
    $region20: #{tpu_custom_call.1} parent=1 // pred_region
      %42 = dma.done [#allocation6], 2048
    $region21: #{tpu_custom_call.1} parent=1 // pred_fallthru
      _
    %v44 = vld [vmem:[#allocation2] sm:$0xff]
    %v45 = vld [vmem:[#allocation2 + $0x8] sm:$0xff]
    %46 = vst [vmem:[#allocation7] sm:$0xff] %v44
    %47 = vst [vmem:[#allocation7 + $0x8] sm:$0xff] %v45
    %v48 = vld [vmem:[#allocation7] sm:$0xff]
    %v49 = vld [vmem:[#allocation7 + $0x8] sm:$0xff]
    %v50 = vld [vmem:[#allocation5] sm:$0xf]
    %v51 = vld [vmem:[#allocation5 + $0x4] sm:$0xf]
    %v52 = vld [vmem:[#allocation5 + $0x8] sm:$0xf]
    %v53 = vld [vmem:[#allocation5 + $0xc] sm:$0xf]
    %v54 = vld [vmem:[#allocation5 + $0x10] sm:$0xf]
    %v55 = vld [vmem:[#allocation5 + $0x14] sm:$0xf]
    %v56 = vld [vmem:[#allocation5 + $0x18] sm:$0xf]
    %v57 = vld [vmem:[#allocation5 + $0x1c] sm:$0xf]
    %v58 = vld [vmem:[#allocation5 + $0x20] sm:$0xf]
    %v59 = vld [vmem:[#allocation5 + $0x24] sm:$0xf]
    %v60 = vld [vmem:[#allocation5 + $0x28] sm:$0xf]
    %v61 = vld [vmem:[#allocation5 + $0x2c] sm:$0xf]
    %v62 = vld [vmem:[#allocation5 + $0x30] sm:$0xf]
    %v63 = vld [vmem:[#allocation5 + $0x34] sm:$0xf]
    %v64 = vld [vmem:[#allocation5 + $0x38] sm:$0xf]
    %v65 = vld [vmem:[#allocation5 + $0x3c] sm:$0xf]
    %v66 = vpack.c.bf16 %v49, %v48
    %v67 = vld [vmem:[%s2] sm:$0x1]
    %v69 = vlaneseq
    %v70 = vshrl.u32 %v69, 7
    %v71 = vsub.s32 0, %v70
    %v72 = vrot.slane %v67, %v71
    %v90 = vunpack.c.l.b16 %v50
    %v91 = vunpack.c.l.b16 %v51
    %v92 = vunpack.c.l.b16 %v52
    %v93 = vunpack.c.l.b16 %v53
    %v94 = vunpack.c.l.b16 %v54
    %v95 = vunpack.c.l.b16 %v55
    %v96 = vunpack.c.l.b16 %v56
    %v97 = vunpack.c.l.b16 %v57
    %v98 = vunpack.c.l.b16 %v58
    %v99 = vunpack.c.l.b16 %v59
    %v100 = vunpack.c.l.b16 %v60
    %v101 = vunpack.c.l.b16 %v61
    %v102 = vunpack.c.l.b16 %v62
    %v103 = vunpack.c.l.b16 %v63
    %v104 = vunpack.c.l.b16 %v64
    %v105 = vunpack.c.l.b16 %v65
    %v106 = vpack.c.b16 %v91, %v90
    %v107 = vpack.c.b16 %v93, %v92
    %v108 = vpack.c.b16 %v95, %v94
    %v109 = vpack.c.b16 %v97, %v96
    %v110 = vpack.c.b16 %v99, %v98
    %v111 = vpack.c.b16 %v101, %v100
    %v112 = vpack.c.b16 %v103, %v102
    %v113 = vpack.c.b16 %v105, %v104
    %122 = vmatprep.subr.bf16.mxu0 0
    %123 = vmatpush1.bf16.msra.mxu0 %v113
    %124 = vmatprep.subr.bf16.mxu0 0
    %125 = vmatpush1.bf16.msra.mxu0 %v112
    %126 = vmatprep.subr.bf16.mxu0 0
    %127 = vmatpush1.bf16.msra.mxu0 %v111
    %128 = vmatprep.subr.bf16.mxu0 0
    %129 = vmatpush1.bf16.msra.mxu0 %v110
    %130 = vmatprep.subr.bf16.mxu0 0
    %131 = vmatpush1.bf16.msra.mxu0 %v109
    %132 = vmatprep.subr.bf16.mxu0 0
    %133 = vmatpush1.bf16.msra.mxu0 %v108
    %134 = vmatprep.subr.bf16.mxu0 0
    %135 = vmatpush1.bf16.msra.mxu0 %v107
    %136 = vmatprep.subr.bf16.mxu0 0
    %137 = vmatpush1.bf16.msra.mxu0 %v106
    %138 = vmatprep.subr.bf16.mxu0 0
    %139 = vmatpush2.bf16.msra.mxu0 0
    %140 = vmatprep.subr.bf16.mxu0 0
    %141 = vmatpush2.bf16.msra.mxu0 0
    %142 = vmatprep.subr.bf16.mxu0 0
    %143 = vmatpush2.bf16.msra.mxu0 0
    %144 = vmatprep.subr.bf16.mxu0 0
    %145 = vmatpush2.bf16.msra.mxu0 0
    %146 = vmatprep.subr.bf16.mxu0 0
    %147 = vmatpush2.bf16.msra.mxu0 0
    %148 = vmatprep.subr.bf16.mxu0 0
    %149 = vmatpush2.bf16.msra.mxu0 0
    %150 = vmatprep.subr.bf16.mxu0 0
    %151 = vmatpush2.bf16.msra.mxu0 0
    %152 = vmatprep.subr.bf16.mxu0 0
    %153 = vmatpush2.bf16.msra.mxu0 0
    %154 = vmatprep.mubr.bf16.mxu0 0
    %155 = vmatmul.mubr.bf16.gmra.mxu0 %v66
    %v156 = vpop.f32.mrf.mxu0
    %v157 = vadd.f32 %v72, %v156
    %v158 = vpop.f32.mrf.mxu0
    %v159 = vpop.f32.mrf.mxu0
    %v160 = vadd.f32 %v72, %v159
    %v161 = vpop.f32.mrf.mxu0
    %162 = vdwg.mxu0
    %v163 = vtanh.pop %v157
    %v164 = vtanh.pop %v160
    %v165 = vadd.f32 %v48, %v163
    %v166 = vadd.f32 %v49, %v164
    %v167 = vmul.f32 %v165, 0.5
    %v168 = vmul.f32 %v166, 0.5
    %169 = vst [vmem:[#allocation7] sm:$0xff] %v167
    %170 = vst [vmem:[#allocation7 + $0x8] sm:$0xff] %v168
    %v171 = vld [vmem:[#allocation7] sm:$0xff]
    %v172 = vld [vmem:[#allocation7 + $0x8] sm:$0xff]
    %s173 = scalar_lea.vmem [#allocation5], 64
    %v174 = vld [vmem:[%s173] sm:$0xf]
    %v175 = vld [vmem:[%s173 + $0x4] sm:$0xf]
    %v176 = vld [vmem:[%s173 + $0x8] sm:$0xf]
    %v177 = vld [vmem:[%s173 + $0xc] sm:$0xf]
    %v178 = vld [vmem:[%s173 + $0x10] sm:$0xf]
    %v179 = vld [vmem:[%s173 + $0x14] sm:$0xf]
    %v180 = vld [vmem:[%s173 + $0x18] sm:$0xf]
    %v181 = vld [vmem:[%s173 + $0x1c] sm:$0xf]
    %v182 = vld [vmem:[%s173 + $0x20] sm:$0xf]
    %v183 = vld [vmem:[%s173 + $0x24] sm:$0xf]
    %v184 = vld [vmem:[%s173 + $0x28] sm:$0xf]
    %v185 = vld [vmem:[%s173 + $0x2c] sm:$0xf]
    %v186 = vld [vmem:[%s173 + $0x30] sm:$0xf]
    %v187 = vld [vmem:[%s173 + $0x34] sm:$0xf]
    %v188 = vld [vmem:[%s173 + $0x38] sm:$0xf]
    %v189 = vld [vmem:[%s173 + $0x3c] sm:$0xf]
    %v190 = vpack.c.bf16 %v172, %v171
    %s191 = scalar_lea.vmem %s2, 1
    %v192 = vld [vmem:[%s191] sm:$0x1]
    %v194 = vlaneseq
    %v195 = vshrl.u32 %v194, 7
    %v196 = vsub.s32 0, %v195
    %v197 = vrot.slane %v192, %v196
    %v215 = vunpack.c.l.b16 %v174
    %v216 = vunpack.c.l.b16 %v175
    %v217 = vunpack.c.l.b16 %v176
    %v218 = vunpack.c.l.b16 %v177
    %v219 = vunpack.c.l.b16 %v178
    %v220 = vunpack.c.l.b16 %v179
    %v221 = vunpack.c.l.b16 %v180
    %v222 = vunpack.c.l.b16 %v181
    %v223 = vunpack.c.l.b16 %v182
    %v224 = vunpack.c.l.b16 %v183
    %v225 = vunpack.c.l.b16 %v184
    %v226 = vunpack.c.l.b16 %v185
    %v227 = vunpack.c.l.b16 %v186
    %v228 = vunpack.c.l.b16 %v187
    %v229 = vunpack.c.l.b16 %v188
    %v230 = vunpack.c.l.b16 %v189
    %v231 = vpack.c.b16 %v216, %v215
    %v232 = vpack.c.b16 %v218, %v217
    %v233 = vpack.c.b16 %v220, %v219
    %v234 = vpack.c.b16 %v222, %v221
    %v235 = vpack.c.b16 %v224, %v223
    %v236 = vpack.c.b16 %v226, %v225
    %v237 = vpack.c.b16 %v228, %v227
    %v238 = vpack.c.b16 %v230, %v229
    %247 = vmatprep.subr.bf16.mxu0 0
    %248 = vmatpush1.bf16.msra.mxu0 %v238
    %249 = vmatprep.subr.bf16.mxu0 0
    %250 = vmatpush1.bf16.msra.mxu0 %v237
    %251 = vmatprep.subr.bf16.mxu0 0
    %252 = vmatpush1.bf16.msra.mxu0 %v236
    %253 = vmatprep.subr.bf16.mxu0 0
    %254 = vmatpush1.bf16.msra.mxu0 %v235
    %255 = vmatprep.subr.bf16.mxu0 0
    %256 = vmatpush1.bf16.msra.mxu0 %v234
    %257 = vmatprep.subr.bf16.mxu0 0
    %258 = vmatpush1.bf16.msra.mxu0 %v233
    %259 = vmatprep.subr.bf16.mxu0 0
    %260 = vmatpush1.bf16.msra.mxu0 %v232
    %261 = vmatprep.subr.bf16.mxu0 0
    %262 = vmatpush1.bf16.msra.mxu0 %v231
    %263 = vmatprep.subr.bf16.mxu0 0
    %264 = vmatpush2.bf16.msra.mxu0 0
    %265 = vmatprep.subr.bf16.mxu0 0
    %266 = vmatpush2.bf16.msra.mxu0 0
    %267 = vmatprep.subr.bf16.mxu0 0
    %268 = vmatpush2.bf16.msra.mxu0 0
    %269 = vmatprep.subr.bf16.mxu0 0
    %270 = vmatpush2.bf16.msra.mxu0 0
    %271 = vmatprep.subr.bf16.mxu0 0
    %272 = vmatpush2.bf16.msra.mxu0 0
    %273 = vmatprep.subr.bf16.mxu0 0
    %274 = vmatpush2.bf16.msra.mxu0 0
    %275 = vmatprep.subr.bf16.mxu0 0
    %276 = vmatpush2.bf16.msra.mxu0 0
    %277 = vmatprep.subr.bf16.mxu0 0
    %278 = vmatpush2.bf16.msra.mxu0 0
    %279 = vmatprep.mubr.bf16.mxu0 0
    %280 = vmatmul.mubr.bf16.gmra.mxu0 %v190
    %v281 = vpop.f32.mrf.mxu0
    %v282 = vadd.f32 %v197, %v281
    %v283 = vpop.f32.mrf.mxu0
    %v284 = vpop.f32.mrf.mxu0
    %v285 = vadd.f32 %v197, %v284
    %v286 = vpop.f32.mrf.mxu0
    %287 = vdwg.mxu0
    %v288 = vtanh.pop %v282
    %v289 = vtanh.pop %v285
    %v290 = vadd.f32 %v171, %v288
    %v291 = vadd.f32 %v172, %v289
    %v292 = vmul.f32 %v290, 0.5
    %v293 = vmul.f32 %v291, 0.5
    %294 = vst [vmem:[#allocation7] sm:$0xff] %v292
    %295 = vst [vmem:[#allocation7 + $0x8] sm:$0xff] %v293
    // Predicated region
    $region22: #{tpu_custom_call.1} parent=1 // pred_check
      _
    $region23: #{tpu_custom_call.1} parent=1 // pred_check_branch
      %297 = sbr.rel (0) target = $region25
    $region24: #{tpu_custom_call.1} parent=1 // pred_region
      %s299 = ssub.s32 256, 256
      %300 = vsyncadd [#allocation4], %s299
      %s301 = sshll.u32 [#allocation7], 4
      %s302 = int_to_ptr.vmem [resolvable:$true] %s301
      %307 = dma.vmem_to_hbm [thread:$0]  %s302, 256, %s3, [#allocation4], 128, 128, 8
    $region25: #{tpu_custom_call.1} parent=1 // pred_fallthru
      _
    // Predicated region
    $region26: #{tpu_custom_call.1} parent=1 // pred_check
      _
    $region27: #{tpu_custom_call.1} parent=1 // pred_check_branch
      %309 = sbr.rel (0) target = $region29
    $region28: #{tpu_custom_call.1} parent=1 // pred_region
      %310 = dma.done [#allocation4], 256
    $region29: #{tpu_custom_call.1} parent=1 // pred_fallthru
      _
    %311 = vsyncpa [#allocation3], 1
    %312 = vsyncpa [#allocation6], 1
    %313 = vsyncpa [#allocation4], 1

</llo_original>
